<compile_context>
chip_gen: v7x
topology: tpu7x:2x2x1
jax: 0.10.0
libtpu: 0.0.40
codegen_flags: <defaults>
</compile_context>

<pallas_src>
import functools

import jax
import jax.numpy as jnp
from jax.experimental import pallas as pl
from jax.experimental.pallas import tpu as pltpu

_LANES = 128
_SUBLANES = 8
_DEFAULT_TILE_BYTES = 4 * 1024 * 1024      # ~4 MiB per input tile per step
_VMEM_LIMIT_BYTES = 40 * 1024 * 1024       # 2 inputs x 2 bufs x 4 MiB + slack


def _dice_partial_kernel(x_ref, t_ref, out_ref, acc_i_ref, acc_s_ref, *,
                         valid_rows, needs_mask):
    """Accumulate per-core partials; emit (intersection, sum(x)+sum(t))."""
    c = pl.program_id(0)               # core-split index ("parallel")
    i = pl.program_id(1)               # streaming step   ("arbitrary")
    steps = pl.num_programs(1)
    block_rows = x_ref.shape[0]

    @pl.when(i == 0)
    def _():
        acc_i_ref[...] = jnp.zeros_like(acc_i_ref)
        acc_s_ref[...] = jnp.zeros_like(acc_s_ref)

    def accumulate(xv, tv):
        # Vreg-aligned partial sums: view the tile as (block_rows//8, 8, 128)
        # and reduce the leading axis -> pure VPU adds per step; the sublane
        # and lane (XLU) reduce happens exactly once in the epilogue.
        acc_i_ref[...] += jnp.sum((xv * tv).reshape(-1, _SUBLANES, _LANES), axis=0)
        acc_s_ref[...] += jnp.sum((xv + tv).reshape(-1, _SUBLANES, _LANES), axis=0)

    x = x_ref[...].astype(jnp.float32)
    t = t_ref[...].astype(jnp.float32)

    if needs_mask:
        # Emitted only when a partial or fully out-of-range block can occur;
        # gated at runtime so every full block still takes the unmasked path.
        row0 = (c * steps + i) * block_rows
        is_full = row0 + block_rows <= valid_rows

        @pl.when(is_full)
        def _():
            accumulate(x, t)

        @pl.when(jnp.logical_not(is_full))
        def _():
            local_row = jax.lax.broadcasted_iota(
                jnp.int32, (block_rows, _LANES), 0)
            valid = (row0 + local_row) < valid_rows
            accumulate(jnp.where(valid, x, 0.0), jnp.where(valid, t, 0.0))
    else:
        accumulate(x, t)

    @pl.when(i == steps - 1)
    def _():
        out_ref[0, 0] = jnp.sum(acc_i_ref[...])   # partial intersection
        out_ref[0, 1] = jnp.sum(acc_s_ref[...])   # partial sum(x) + sum(t)


def dice_loss(inputs, targets, smooth=1.0, *, tile_bytes=_DEFAULT_TILE_BYTES):
    """Pallas TPU DiceLoss forward. Returns a scalar float32."""
    assert inputs.shape == targets.shape, "inputs/targets must match in shape"

    x = jnp.reshape(inputs, (-1,))     # native dtype: no f32 copy in HBM
    t = jnp.reshape(targets, (-1,))
    n = x.shape[0]

    gran = _SUBLANES * _LANES          # 1024 elements = one vreg row-group
    rows = (n // gran) * _SUBLANES     # always a multiple of 8
    n_aligned = rows * _LANES

    intersection = jnp.zeros((), jnp.float32)
    sum_xt = jnp.zeros((), jnp.float32)

    if rows > 0:
        # Aligned prefix streams through the kernel; pure reshape (no copy)
        # when numel is already a multiple of 1024.
        x2 = (x if n_aligned == n else x[:n_aligned]).reshape(rows, _LANES)
        t2 = (t if n_aligned == n else t[:n_aligned]).reshape(rows, _LANES)

        # Dtype-aware tile sizing: keep ~tile_bytes per input tile regardless
        # of element size so per-step overhead stays constant across dtypes.
        itemsize = max(jnp.dtype(x.dtype).itemsize, jnp.dtype(t.dtype).itemsize)
        target_rows = max(
            _SUBLANES,
            (tile_bytes // (_LANES * itemsize)) // _SUBLANES * _SUBLANES)
        block_rows = min(target_rows, rows)
        total_blocks = pl.cdiv(rows, block_rows)

        # Always shard row-blocks across both TensorCores (v7x); harmless
        # elsewhere.  Ceil division may give core 1 one out-of-range step,
        # which is clamped in the index_map and zeroed by the in-kernel mask.
        splits = 2 if total_blocks >= 2 else 1
        steps = pl.cdiv(total_blocks, splits)
        needs_mask = (splits * steps * block_rows) != rows

        last_block = total_blocks - 1
        if splits * steps > total_blocks:
            def blk_map(c, i):
                return (jnp.minimum(c * steps + i, last_block), 0)
        else:
            def blk_map(c, i):
                return (c * steps + i, 0)

        kernel = functools.partial(_dice_partial_kernel,
                                   valid_rows=rows, needs_mask=needs_mask)

        partials = pl.pallas_call(
            kernel,
            out_shape=jax.ShapeDtypeStruct((splits, 2), jnp.float32),
            grid_spec=pltpu.PrefetchScalarGridSpec(
                num_scalar_prefetch=0,
                grid=(splits, steps),
                in_specs=[
                    pl.BlockSpec((block_rows, _LANES), blk_map),
                    pl.BlockSpec((block_rows, _LANES), blk_map),
                ],
                out_specs=pl.BlockSpec((1, 2), lambda c, i: (c, 0),
                                       memory_space=pltpu.SMEM),
                scratch_shapes=[
                    pltpu.VMEM((_SUBLANES, _LANES), jnp.float32),  # sum(x*t)
                    pltpu.VMEM((_SUBLANES, _LANES), jnp.float32),  # sum(x+t)
                ],
            ),
            compiler_params=pltpu.CompilerParams(
                dimension_semantics=("parallel", "arbitrary"),
                vmem_limit_bytes=_VMEM_LIMIT_BYTES,
            ),
        )(x2, t2)

        intersection = intersection + jnp.sum(partials[:, 0])
        sum_xt = sum_xt + jnp.sum(partials[:, 1])

    if n_aligned != n:
        # <=1023-element ragged tail: reduce with plain jnp in the wrapper.
        xt = x[n_aligned:].astype(jnp.float32)
        tt = t[n_aligned:].astype(jnp.float32)
        intersection = intersection + jnp.sum(xt * tt)
        sum_xt = sum_xt + jnp.sum(xt) + jnp.sum(tt)

    smooth = jnp.asarray(smooth, jnp.float32)
    dice = (2.0 * intersection + smooth) / (sum_xt + smooth)
    return 1.0 - dice


def dice_loss_ref(inputs, targets, smooth=1.0):
    x = jnp.reshape(inputs, (-1,)).astype(jnp.float32)
    t = jnp.reshape(targets, (-1,)).astype(jnp.float32)
    inter = jnp.sum(x * t)
    dice = (2.0 * inter + smooth) / (jnp.sum(x) + jnp.sum(t) + smooth)
    return 1.0 - dice


if __name__ == "__main__":
    key = jax.random.PRNGKey(0)

    # NCHW segmentation-mask style shapes.
    cases = [
        # (shape, inputs dtype, tile_bytes override)
        ((2, 1, 32, 32), jnp.float32, None),        # single aligned block
        ((2, 1, 16, 16), jnp.bfloat16, None),       # < 1024 elems: tail-only path
        ((2, 3, 50, 50), jnp.bfloat16, None),       # aligned prefix + ragged tail
        ((2, 3, 224, 224), jnp.float32, None),      # large aligned single block
        ((2, 3, 224, 224), jnp.float32, 64 * 1024), # multi-block: core split + mask
    ]
    for idx, (shape, dtype, tb) in enumerate(cases):
        k1, k2 = jax.random.split(jax.random.fold_in(key, idx))
        inputs = jax.nn.sigmoid(
            jax.random.normal(k1, shape, dtype=jnp.float32)).astype(dtype)
        targets = (jax.random.uniform(k2, shape) > 0.5).astype(jnp.float32)

        kwargs = {} if tb is None else {"tile_bytes": tb}
        loss = jax.block_until_ready(
            dice_loss(inputs, targets, smooth=1.0, **kwargs))
        ref = dice_loss_ref(inputs, targets, smooth=1.0)
        assert jnp.allclose(loss, ref, atol=1e-4, rtol=1e-4), (
            shape, dtype, loss, ref)

    print("KERNEL_OK")
</pallas_src>

<mosaic_0001>
module attributes {stable_mosaic.version = 11 : i64} {
  func.func @_dice_partial_kernel(%arg0: i32, %arg1: i32, %arg2: memref<16x128xf32, #tpu.memory_space<vmem>>, %arg3: memref<16x128xf32, #tpu.memory_space<vmem>>, %arg4: memref<1x2xf32, #tpu.memory_space<smem>>, %arg5: memref<8x128xf32, #tpu.memory_space<vmem>>, %arg6: memref<8x128xf32, #tpu.memory_space<vmem>>) attributes {dimension_semantics = [#tpu.dimension_semantics<parallel>, #tpu.dimension_semantics<arbitrary>], iteration_bounds = array<i64: 1, 1>, scalar_prefetch = 0 : i64, scratch_operands = 2 : i64, tpu.core_type = #tpu.core_type<tc>, window_params = [{transform_indices = @transform_0, window_bounds = array<i64: 16, 128>}, {transform_indices = @transform_1, window_bounds = array<i64: 16, 128>}, {transform_indices = @transform_2, window_bounds = array<i64: 1, 2>}]} {
    %c0_i32 = arith.constant 0 : i32
    %0 = arith.cmpi eq, %arg1, %c0_i32 : i32
    %1 = arith.extui %0 : i1 to i32
    %c0_i32_0 = arith.constant 0 : i32
    %2 = arith.cmpi ne, %1, %c0_i32_0 : i32
    scf.if %2 {
      %cst_15 = arith.constant 0.000000e+00 : f32
      %20 = vector.broadcast %cst_15 : f32 to vector<8x128xf32>
      %c0_16 = arith.constant 0 : index
      %c0_17 = arith.constant 0 : index
      %21 = vector.load %arg5[%c0_16, %c0_17] : memref<8x128xf32, #tpu.memory_space<vmem>>, vector<8x128xf32>
      tpu.vector_store %arg5[%c0_16, %c0_17], %20 {strides = array<i32>} : memref<8x128xf32, #tpu.memory_space<vmem>>, vector<8x128xf32>,
      %cst_18 = arith.constant 0.000000e+00 : f32
      %22 = vector.broadcast %cst_18 : f32 to vector<8x128xf32>
      %c0_19 = arith.constant 0 : index
      %c0_20 = arith.constant 0 : index
      %23 = vector.load %arg6[%c0_19, %c0_20] : memref<8x128xf32, #tpu.memory_space<vmem>>, vector<8x128xf32>
      tpu.vector_store %arg6[%c0_19, %c0_20], %22 {strides = array<i32>} : memref<8x128xf32, #tpu.memory_space<vmem>>, vector<8x128xf32>,
    } else {
    }
    %c0 = arith.constant 0 : index
    %c0_1 = arith.constant 0 : index
    %3 = vector.load %arg2[%c0, %c0_1] : memref<16x128xf32, #tpu.memory_space<vmem>>, vector<16x128xf32>
    %c0_2 = arith.constant 0 : index
    %c0_3 = arith.constant 0 : index
    %4 = vector.load %arg3[%c0_2, %c0_3] : memref<16x128xf32, #tpu.memory_space<vmem>>, vector<16x128xf32>
    %c0_4 = arith.constant 0 : index
    %c0_5 = arith.constant 0 : index
    %5 = vector.load %arg5[%c0_4, %c0_5] : memref<8x128xf32, #tpu.memory_space<vmem>>, vector<8x128xf32>
    %6 = arith.mulf %3, %4 : vector<16x128xf32>
    %7 = vector.shape_cast %6 : vector<16x128xf32> to vector<2x8x128xf32>
    %cst = arith.constant dense<0.000000e+00> : vector<8x128xf32>
    %8 = vector.multi_reduction <add>, %7, %cst [0] : vector<2x8x128xf32> to vector<8x128xf32>
    %9 = arith.addf %5, %8 : vector<8x128xf32>
    %c0_6 = arith.constant 0 : index
    %c0_7 = arith.constant 0 : index
    %10 = vector.load %arg5[%c0_6, %c0_7] : memref<8x128xf32, #tpu.memory_space<vmem>>, vector<8x128xf32>
    tpu.vector_store %arg5[%c0_6, %c0_7], %9 {strides = array<i32>} : memref<8x128xf32, #tpu.memory_space<vmem>>, vector<8x128xf32>,
    %c0_8 = arith.constant 0 : index
    %c0_9 = arith.constant 0 : index
    %11 = vector.load %arg6[%c0_8, %c0_9] : memref<8x128xf32, #tpu.memory_space<vmem>>, vector<8x128xf32>
    %12 = arith.addf %3, %4 : vector<16x128xf32>
    %13 = vector.shape_cast %12 : vector<16x128xf32> to vector<2x8x128xf32>
    %cst_10 = arith.constant dense<0.000000e+00> : vector<8x128xf32>
    %14 = vector.multi_reduction <add>, %13, %cst_10 [0] : vector<2x8x128xf32> to vector<8x128xf32>
    %15 = arith.addf %11, %14 : vector<8x128xf32>
    %c0_11 = arith.constant 0 : index
    %c0_12 = arith.constant 0 : index
    %16 = vector.load %arg6[%c0_11, %c0_12] : memref<8x128xf32, #tpu.memory_space<vmem>>, vector<8x128xf32>
    tpu.vector_store %arg6[%c0_11, %c0_12], %15 {strides = array<i32>} : memref<8x128xf32, #tpu.memory_space<vmem>>, vector<8x128xf32>,
    %c0_i32_13 = arith.constant 0 : i32
    %17 = arith.cmpi eq, %arg1, %c0_i32_13 : i32
    %18 = arith.extui %17 : i1 to i32
    %c0_i32_14 = arith.constant 0 : i32
    %19 = arith.cmpi ne, %18, %c0_i32_14 : i32
    scf.if %19 {
      %c0_15 = arith.constant 0 : index
      %c0_16 = arith.constant 0 : index
      %20 = vector.load %arg5[%c0_15, %c0_16] : memref<8x128xf32, #tpu.memory_space<vmem>>, vector<8x128xf32>
      %21 = vector.shape_cast %20 : vector<8x128xf32> to vector<1x8x128xf32>
      %cst_17 = arith.constant dense<0.000000e+00> : vector<1xf32>
      %22 = vector.multi_reduction <add>, %21, %cst_17 [1, 2] : vector<1x8x128xf32> to vector<1xf32>
      %23 = vector.shape_cast %22 : vector<1xf32> to vector<1x1x1xf32>
      %24 = vector.extract %23[0, 0, 0] : f32 from vector<1x1x1xf32>
      %c0_18 = arith.constant 0 : index
      %c0_19 = arith.constant 0 : index
      %25 = memref.load %arg4[%c0_18, %c0_19] : memref<1x2xf32, #tpu.memory_space<smem>>
      memref.store %24, %arg4[%c0_18, %c0_19] : memref<1x2xf32, #tpu.memory_space<smem>>
      %c0_20 = arith.constant 0 : index
      %c0_21 = arith.constant 0 : index
      %26 = vector.load %arg6[%c0_20, %c0_21] : memref<8x128xf32, #tpu.memory_space<vmem>>, vector<8x128xf32>
      %27 = vector.shape_cast %26 : vector<8x128xf32> to vector<1x8x128xf32>
      %cst_22 = arith.constant dense<0.000000e+00> : vector<1xf32>
      %28 = vector.multi_reduction <add>, %27, %cst_22 [1, 2] : vector<1x8x128xf32> to vector<1xf32>
      %29 = vector.shape_cast %28 : vector<1xf32> to vector<1x1x1xf32>
      %30 = vector.extract %29[0, 0, 0] : f32 from vector<1x1x1xf32>
      %c0_23 = arith.constant 0 : index
      %c1 = arith.constant 1 : index
      %31 = memref.load %arg4[%c0_23, %c1] : memref<1x2xf32, #tpu.memory_space<smem>>
      memref.store %30, %arg4[%c0_23, %c1] : memref<1x2xf32, #tpu.memory_space<smem>>
    } else {
    }
    return
  }
  func.func @transform_0(%arg0: i32, %arg1: i32) -> (i32, i32) {
    %c1_i32 = arith.constant 1 : i32
    %0 = arith.muli %arg0, %c1_i32 : i32
    %1 = arith.addi %0, %arg1 : i32
    %c0_i32 = arith.constant 0 : i32
    %c0_i32_0 = arith.constant 0 : i32
    return %1, %c0_i32 : i32, i32
  }
  func.func @transform_1(%arg0: i32, %arg1: i32) -> (i32, i32) {
    %c1_i32 = arith.constant 1 : i32
    %0 = arith.muli %arg0, %c1_i32 : i32
    %1 = arith.addi %0, %arg1 : i32
    %c0_i32 = arith.constant 0 : i32
    %c0_i32_0 = arith.constant 0 : i32
    return %1, %c0_i32 : i32, i32
  }
  func.func @transform_2(%arg0: i32, %arg1: i32) -> (i32, i32) {
    %c0_i32 = arith.constant 0 : i32
    %c0_i32_0 = arith.constant 0 : i32
    return %arg0, %c0_i32 : i32, i32
  }
}

</mosaic_0001>

<llo_original>
// kernel: tpu_custom_call.1
$region0: #{tpu_custom_call.1}
  #allocation0 [shape = 'u32[]', space=smem, size = 0x4, offset = 0x4, fixed_abs, tag = 'smem constant byte address 0x4 - core index']
  #allocation1 [shape = 'u32[144,128]{1,0:T(1,128)}', space=vmem, size = 0x12000, scoped, tag = 'internal scratch']
  #allocation2 [shape = 'f32[8,128]{1,0:T(8,128)}', space=vmem, size = 0x1000, scoped, tag = 'scratch operand']
  #allocation3 [shape = 'f32[8,128]{1,0:T(8,128)}', space=vmem, size = 0x1000, scoped, tag = 'scratch operand']
  %s0 = inlined_call_operand.hbm [shape: f32[16,128], index: 0, kind: input, shape index: {}]
  %s1 = inlined_call_operand.hbm [shape: f32[16,128], index: 1, kind: input, shape index: {}]
  %s2 = inlined_call_operand.hbm [shape: f32[1,2], index: 2, kind: output, shape index: {}]
  %s3 = sld [smem:[#allocation0]]
  $region34: #{tpu_custom_call.1} parent=0
    _
  %s5 = ssub.s32 1, %s3
  %s6 = scalar_select 0, %s5, %s3
  $region1: #{tpu_custom_call.1} parent=0
    #allocation4 [shape = 'u8[8192]{0}', space=vmem, size = 0x2000, scoped, tag = 'input window, operand 0, single buffered']
    #allocation5 [shape = 's32[1]{0}', space=sflag, size = 0x4, scoped, tag = 'scoped memory for tpu_custom_call.1']
    #allocation6 [shape = 's32[1]{0}', space=sflag, size = 0x4, scoped, tag = 'scoped memory for tpu_custom_call.1']
    #allocation7 [shape = 'u8[8192]{0}', space=vmem, size = 0x2000, scoped, tag = 'input window, operand 1, single buffered']
    #allocation8 [shape = 's32[1]{0}', space=sflag, size = 0x4, scoped, tag = 'scoped memory for tpu_custom_call.1']
    #allocation9 [shape = 'u8[512]{0}', space=smem, size = 0x200, scoped, tag = 'output window, operand 0, single buffered']
    %7 = vsyncpa [#allocation5], 0
    %8 = vsyncpa [#allocation8], 0
    %9 = vsyncpa [#allocation6], 0
    // Predicated region
    $region2: #{tpu_custom_call.1} parent=1 // pred_check
      _
    $region3: #{tpu_custom_call.1} parent=1 // pred_check_branch
      %11 = sbr.rel (0) target = $region5
    $region4: #{tpu_custom_call.1} parent=1 // pred_region
      %s12 = sadd.s32 0, 0
      %s13 = smul.u32 2, %s12
      %s15 = ssub.s32 256, 256
      %16 = vsyncadd [#allocation5], %s15
      %s17 = smul.addr %s13, 128
      %s18 = scalar_lea.hbm %s0, %s17
      %s19 = sshll.u32 [#allocation4], 4
      %s20 = int_to_ptr.vmem [resolvable:$true] %s19
      %25 = dma.hbm_to_vmem [thread:$0]  %s18, 256, %s20, [#allocation5], 128, 128, 8
    $region5: #{tpu_custom_call.1} parent=1 // pred_fallthru
      _
    // Predicated region
    $region6: #{tpu_custom_call.1} parent=1 // pred_check
      _
    $region7: #{tpu_custom_call.1} parent=1 // pred_check_branch
      %27 = sbr.rel (0) target = $region9
    $region8: #{tpu_custom_call.1} parent=1 // pred_region
      %s28 = sadd.s32 0, 0
      %s29 = smul.u32 2, %s28
      %s31 = ssub.s32 256, 256
      %32 = vsyncadd [#allocation8], %s31
      %s33 = smul.addr %s29, 128
      %s34 = scalar_lea.hbm %s1, %s33
      %s35 = sshll.u32 [#allocation7], 4
      %s36 = int_to_ptr.vmem [resolvable:$true] %s35
      %41 = dma.hbm_to_vmem [thread:$0]  %s34, 256, %s36, [#allocation8], 128, 128, 8
    $region9: #{tpu_custom_call.1} parent=1 // pred_fallthru
      _
    // Predicated region
    $region10: #{tpu_custom_call.1} parent=1 // pred_check
      _
    $region11: #{tpu_custom_call.1} parent=1 // pred_check_branch
      %43 = sbr.rel (0) target = $region13
    $region12: #{tpu_custom_call.1} parent=1 // pred_region
      %44 = dma.done [#allocation5], 256
    $region13: #{tpu_custom_call.1} parent=1 // pred_fallthru
      _
    // Predicated region
    $region14: #{tpu_custom_call.1} parent=1 // pred_check
      _
    $region15: #{tpu_custom_call.1} parent=1 // pred_check_branch
      %46 = sbr.rel (0) target = $region17
    $region16: #{tpu_custom_call.1} parent=1 // pred_region
      %47 = dma.done [#allocation8], 256
    $region17: #{tpu_custom_call.1} parent=1 // pred_fallthru
      _
    %s48 = sadd.s32 0, 0
    %s49 = smul.u32 2, %s48
    %s50 = sadd.s32 0, 0
    %s51 = smul.u32 2, %s50
    %p52 = scmp.eq.s32.totalorder 0, 0
    // Predicated region
    $region18: #{tpu_custom_call.1} parent=1 // pred_check
      %p53 = pneg %p52
    $region19: #{tpu_custom_call.1} parent=1 // pred_check_branch
      %55 = sbr.rel (%p53) target = $region21
    $region20: #{tpu_custom_call.1} parent=1 // pred_region
      %56 = vst [vmem:[#allocation2] sm:$0xff] 0.0
      %57 = vst [vmem:[#allocation3] sm:$0xff] 0.0
    $region21: #{tpu_custom_call.1} parent=1 // pred_fallthru
      _
    %v58 = vld [vmem:[#allocation4] sm:$0xff]
    %v59 = vld [vmem:[#allocation4 + $0x8] sm:$0xff]
    %v60 = vld [vmem:[#allocation7] sm:$0xff]
    %v61 = vld [vmem:[#allocation7 + $0x8] sm:$0xff]
    %v62 = vld [vmem:[#allocation2] sm:$0xff]
    %v63 = vmul.f32 %v58, %v60
    %v64 = vmul.f32 %v59, %v61
    %v65 = vadd.f32 %v63, %v64
    %v66 = vadd.f32 %v62, %v65
    %67 = vst [vmem:[#allocation2] sm:$0xff] %v66
    %v68 = vld [vmem:[#allocation3] sm:$0xff]
    %v69 = vadd.f32 %v58, %v60
    %v70 = vadd.f32 %v59, %v61
    %v71 = vadd.f32 %v69, %v70
    %v72 = vadd.f32 %v68, %v71
    %73 = vst [vmem:[#allocation3] sm:$0xff] %v72
    // Predicated region
    $region22: #{tpu_custom_call.1} parent=1 // pred_check
      %p74 = pneg %p52
    $region23: #{tpu_custom_call.1} parent=1 // pred_check_branch
      %76 = sbr.rel (%p74) target = $region25
    $region24: #{tpu_custom_call.1} parent=1 // pred_region
      %v77 = vld [vmem:[#allocation2] sm:$0xff]
      %78 = vadd.xlane.f32.xlu0 %v77
      %v79 = vpop.xlane.xlu0 %78
      %v80 = vrot.slane %v79, 4
      %v81 = vadd.f32 %v79, %v80
      %v82 = vrot.slane %v81, 2
      %v83 = vadd.f32 %v81, %v82
      %v84 = vrot.slane %v83, 1
      %v85 = vadd.f32 %v83, %v84
      %s86 = vtos %v85
      %s87 = scalar_lea.smem [#allocation9], 0
      %88 = sst [smem:[%s87]] %s86
      %v89 = vld [vmem:[#allocation3] sm:$0xff]
      %90 = vadd.xlane.f32.xlu0 %v89
      %v91 = vpop.xlane.xlu0 %90
      %v92 = vrot.slane %v91, 4
      %v93 = vadd.f32 %v91, %v92
      %v94 = vrot.slane %v93, 2
      %v95 = vadd.f32 %v93, %v94
      %v96 = vrot.slane %v95, 1
      %v97 = vadd.f32 %v95, %v96
      %s98 = vtos %v97
      %s99 = scalar_lea.smem [#allocation9], 1
      %100 = sst [smem:[%s99]] %s98
    $region25: #{tpu_custom_call.1} parent=1 // pred_fallthru
      _
    // Predicated region
    $region26: #{tpu_custom_call.1} parent=1 // pred_check
      _
    $region27: #{tpu_custom_call.1} parent=1 // pred_check_branch
      %102 = sbr.rel (0) target = $region29
    $region28: #{tpu_custom_call.1} parent=1 // pred_region
      %s104 = ssub.s32 16, 16
      %105 = vsyncadd [#allocation6], %s104
      %108 = dma.smem_to_hbm [#allocation9], 16, %s2, [#allocation6]
    $region29: #{tpu_custom_call.1} parent=1 // pred_fallthru
      _
    // Predicated region
    $region30: #{tpu_custom_call.1} parent=1 // pred_check
      _
    $region31: #{tpu_custom_call.1} parent=1 // pred_check_branch
      %110 = sbr.rel (0) target = $region33
    $region32: #{tpu_custom_call.1} parent=1 // pred_region
      %111 = dma.done [#allocation6], 16
    $region33: #{tpu_custom_call.1} parent=1 // pred_fallthru
      _
    %112 = sfence
    %113 = vsyncpa [#allocation5], 1
    %114 = vsyncpa [#allocation8], 1
    %115 = vsyncpa [#allocation6], 1

</llo_original>
